<compile_context>
chip_gen: v6e
topology: v6e:2x2x1
jax: 0.10.0
libtpu: 0.0.40
codegen_flags: <defaults>
</compile_context>

<pallas_src>
import math

import jax
import jax.numpy as jnp
import numpy as np
from jax.experimental import pallas as pl
from jax.experimental.pallas import tpu as pltpu

_HALF_LOG_2PI = 0.9189385332046727  # 0.5 * log(2*pi)
_SHIFT = 8                          # recurrence shifts before the asymptotic series


def _lgamma(x):
    """log Gamma(x) for x > 0 via recurrence + Stirling series (f32-accurate)."""
    shift_log = jnp.zeros_like(x)
    z = x
    for _ in range(_SHIFT):
        shift_log = shift_log + jnp.log(z)
        z = z + 1.0
    zinv = 1.0 / z
    zinv2 = zinv * zinv
    series = zinv * (1.0 / 12.0 + zinv2 * (-1.0 / 360.0
                     + zinv2 * (1.0 / 1260.0 + zinv2 * (-1.0 / 1680.0))))
    lg = (z - 0.5) * jnp.log(z) - z + _HALF_LOG_2PI + series
    return lg - shift_log


def _digamma(x):
    """digamma(x) for x > 0 via recurrence + asymptotic series (f32-accurate)."""
    shift = jnp.zeros_like(x)
    z = x
    for _ in range(_SHIFT):
        shift = shift + 1.0 / z
        z = z + 1.0
    zinv = 1.0 / z
    zinv2 = zinv * zinv
    series = zinv2 * (1.0 / 12.0 - zinv2 * (1.0 / 120.0 - zinv2 * (1.0 / 252.0)))
    return jnp.log(z) - 0.5 * zinv - series - shift


def ponder_bayesian_loss(preds, p, halted_at, targets, regularization_warmup_factor,
                         *, lambdas, beta_params, beta_prior, scale_reg,
                         row_block_bytes=2 * 1024 * 1024):
    assert lambdas is not None, 'Must provide lambdas!'
    del halted_at, lambdas  # accepted for API parity; unused by the forward math
    alphas, betas = beta_params
    S, B, L = preds.shape
    R = S * B

    # Flatten (step, batch) into rows; keep the native dtypes (no f32 upcast here).
    preds2d = preds.reshape(R, L)
    p2d = p.reshape(R, 1)
    tgt2d = jnp.tile(targets.astype(jnp.int32), S).reshape(R, 1)

    # Row-block size: keep the f32 working tile around `row_block_bytes` so the
    # double-buffered inputs + in-kernel temps fit scoped VMEM on every
    # generation (v7x has only 64 MiB physical; v5e's scoped default is 16 MiB,
    # raised below to 32 MiB).
    lane_bytes = max(L, 128) * 4
    tr = max(8, (row_block_bytes // lane_bytes) // 8 * 8)
    tr = min(tr, ((R + 7) // 8) * 8)
    r_pad = ((R + tr - 1) // tr) * tr
    if r_pad != R:
        pad = r_pad - R
        # Padded rows contribute exactly 0 to l_rec because their p weights are 0.
        preds2d = jnp.pad(preds2d, ((0, pad), (0, 0)))
        p2d = jnp.pad(p2d, ((0, pad), (0, 0)))
        tgt2d = jnp.pad(tgt2d, ((0, pad), (0, 0)))
    num_blocks = r_pad // tr

    a_prime = float(beta_prior[0])
    b_prime = float(beta_prior[1])
    lbeta_prior = (math.lgamma(a_prime) + math.lgamma(b_prime)
                   - math.lgamma(a_prime + b_prime))
    inv_b = 1.0 / B

    def kernel(preds_ref, p_ref, tgt_ref, a_ref, b_ref,
               l_rec_ref, l_reg_ref, acc_ref):
        step = pl.program_id(0)

        @pl.when(step == 0)
        def _init():
            acc_ref[...] = jnp.zeros_like(acc_ref)

        x = preds_ref[...].astype(jnp.float32)                  # (tr, L)
        pv = p_ref[...].astype(jnp.float32)                     # (tr, 1)
        tgt = tgt_ref[...]                                      # (tr, 1) int32

        # Cross-entropy per row (stable logsumexp; target gather via select,
        # no materialised f32 one-hot).
        m = jnp.max(x, axis=-1, keepdims=True)                  # (tr, 1)
        lse = jnp.log(jnp.sum(jnp.exp(x - m), axis=-1, keepdims=True)) + m
        iota_l = jax.lax.broadcasted_iota(jnp.int32, x.shape, 1)
        x_tgt = jnp.sum(jnp.where(iota_l == tgt, x, 0.0),
                        axis=-1, keepdims=True)                 # (tr, 1)
        ce = lse - x_tgt                                        # (tr, 1)

        acc_ref[...] += jnp.sum(ce * pv, axis=0, keepdims=True)

        @pl.when(step == num_blocks - 1)
        def _finalize():
            l_rec_ref[...] = acc_ref[...] * inv_b

            # Beta-KL regulariser on the small (S, B) posterior parameters.
            a = a_ref[...].astype(jnp.float32)
            b = b_ref[...].astype(jnp.float32)
            kl = (lbeta_prior
                  - (_lgamma(a) + _lgamma(b) - _lgamma(a + b))
                  + (a - a_prime) * _digamma(a)
                  + (b - b_prime) * _digamma(b)
                  + (a_prime - a + b_prime - b) * _digamma(a + b))   # (S, B)
            kl_rows = jnp.sum(kl, axis=1, keepdims=True)             # (S, 1)
            l_reg_ref[...] = jnp.sum(kl_rows, axis=0, keepdims=True) * inv_b

    l_rec, l_reg = pl.pallas_call(
        kernel,
        out_shape=(jax.ShapeDtypeStruct((1, 1), jnp.float32),
                   jax.ShapeDtypeStruct((1, 1), jnp.float32)),
        grid=(num_blocks,),
        in_specs=[
            pl.BlockSpec((tr, L), lambda i: (i, 0)),     # preds rows (streamed)
            pl.BlockSpec((tr, 1), lambda i: (i, 0)),     # p rows (streamed)
            pl.BlockSpec((tr, 1), lambda i: (i, 0)),     # targets rows (streamed)
            pl.BlockSpec((S, B), lambda i: (0, 0)),      # alphas (resident)
            pl.BlockSpec((S, B), lambda i: (0, 0)),      # betas (resident)
        ],
        out_specs=(
            pl.BlockSpec((1, 1), lambda i: (0, 0)),
            pl.BlockSpec((1, 1), lambda i: (0, 0)),
        ),
        scratch_shapes=[pltpu.VMEM((1, 1), jnp.float32)],
        compiler_params=pltpu.CompilerParams(
            dimension_semantics=("arbitrary",),
            vmem_limit_bytes=32 * 1024 * 1024),
    )(preds2d, p2d, tgt2d, alphas, betas)

    l_rec = l_rec[0, 0]
    l_reg = l_reg[0, 0]
    return l_rec, regularization_warmup_factor * scale_reg * l_reg


def _reference(preds, p, targets, alphas, betas, beta_prior, warmup, scale_reg):
    """Pure-JAX reference mirroring the PyTorch PonderBayesianLoss forward."""
    preds = preds.astype(jnp.float32)
    p = p.astype(jnp.float32)
    logsm = jax.nn.log_softmax(preds, axis=-1)
    ce = -jnp.take_along_axis(logsm, targets[None, :, None], axis=-1)[..., 0]
    l_rec = jnp.mean(jnp.sum(p * ce, axis=0))

    gammaln = jax.scipy.special.gammaln
    digamma = jax.scipy.special.digamma
    a_p, b_p = float(beta_prior[0]), float(beta_prior[1])

    def lbeta(x, y):
        return gammaln(x) + gammaln(y) - gammaln(x + y)

    a = alphas.astype(jnp.float32)
    b = betas.astype(jnp.float32)
    kl = (lbeta(jnp.float32(a_p), jnp.float32(b_p)) - lbeta(a, b)
          + (a - a_p) * digamma(a)
          + (b - b_p) * digamma(b)
          + (a_p - a + b_p - b) * digamma(a + b))
    l_reg = jnp.mean(jnp.sum(kl, axis=0))
    return l_rec, warmup * scale_reg * l_reg


if __name__ == "__main__":
    key = jax.random.PRNGKey(0)
    n_steps, batch, logits = 8, 4, 16
    beta_prior = (2.0, 3.0)
    scale_reg = 0.01
    warmup = 0.5

    k1, k2, k3, k4, k5, k6 = jax.random.split(key, 6)
    preds = jax.random.normal(k1, (n_steps, batch, logits), dtype=jnp.float32)
    # p: per-sample halting distribution over steps (columns sum to 1).
    p = jax.nn.softmax(jax.random.normal(k2, (n_steps, batch)), axis=0)
    targets = jax.random.randint(k3, (batch,), 0, logits, dtype=jnp.int32)
    halted_at = jnp.full((batch,), n_steps - 1, dtype=jnp.int32)
    lambdas = jax.random.uniform(k4, (n_steps, batch), minval=0.05, maxval=0.95)
    alphas = 1.0 + 4.0 * jax.random.uniform(k5, (n_steps, batch), dtype=jnp.float32)
    betas = 1.0 + 4.0 * jax.random.uniform(k6, (n_steps, batch), dtype=jnp.float32)

    l_rec, l_reg = ponder_bayesian_loss(
        preds, p, halted_at, targets, warmup,
        lambdas=lambdas, beta_params=(alphas, betas),
        beta_prior=beta_prior, scale_reg=scale_reg)
    jax.block_until_ready((l_rec, l_reg))

    ref_rec, ref_reg = _reference(preds, p, targets, alphas, betas,
                                  beta_prior, warmup, scale_reg)
    np.testing.assert_allclose(np.asarray(l_rec), np.asarray(ref_rec),
                               rtol=1e-5, atol=1e-5)
    np.testing.assert_allclose(np.asarray(l_reg), np.asarray(ref_reg),
                               rtol=2e-4, atol=1e-6)
    print("KERNEL_OK")
</pallas_src>

<mosaic_0001>
module attributes {stable_mosaic.version = 11 : i64} {
  func.func @kernel(%arg0: i32, %arg1: memref<32x16xf32, #tpu.memory_space<vmem>>, %arg2: memref<32x1xf32, #tpu.memory_space<vmem>>, %arg3: memref<32x1xi32, #tpu.memory_space<vmem>>, %arg4: memref<8x4xf32, #tpu.memory_space<vmem>>, %arg5: memref<8x4xf32, #tpu.memory_space<vmem>>, %arg6: memref<1x1xf32, #tpu.memory_space<vmem>>, %arg7: memref<1x1xf32, #tpu.memory_space<vmem>>, %arg8: memref<1x1xf32, #tpu.memory_space<vmem>>) attributes {dimension_semantics = [#tpu.dimension_semantics<arbitrary>], iteration_bounds = array<i64: 1>, scalar_prefetch = 0 : i64, scratch_operands = 1 : i64, tpu.core_type = #tpu.core_type<tc>, window_params = [{transform_indices = @transform_0, window_bounds = array<i64: 32, 16>}, {transform_indices = @transform_1, window_bounds = array<i64: 32, 1>}, {transform_indices = @transform_2, window_bounds = array<i64: 32, 1>}, {pipeline_mode = #tpu.pipeline_mode<synchronous>, transform_indices = @transform_3, window_bounds = array<i64: 8, 4>}, {pipeline_mode = #tpu.pipeline_mode<synchronous>, transform_indices = @transform_4, window_bounds = array<i64: 8, 4>}, {pipeline_mode = #tpu.pipeline_mode<synchronous>, transform_indices = @transform_5, window_bounds = array<i64: 1, 1>}, {pipeline_mode = #tpu.pipeline_mode<synchronous>, transform_indices = @transform_6, window_bounds = array<i64: 1, 1>}]} {
    %c0_i32 = arith.constant 0 : i32
    %0 = arith.cmpi eq, %arg0, %c0_i32 : i32
    %1 = arith.extui %0 : i1 to i32
    %c0_i32_0 = arith.constant 0 : i32
    %2 = arith.cmpi ne, %1, %c0_i32_0 : i32
    scf.if %2 {
      %cst_16 = arith.constant 0.000000e+00 : f32
      %32 = vector.broadcast %cst_16 : f32 to vector<1x1xf32>
      %c0_17 = arith.constant 0 : index
      %c0_18 = arith.constant 0 : index
      %33 = vector.load %arg8[%c0_17, %c0_18] : memref<1x1xf32, #tpu.memory_space<vmem>>, vector<1x1xf32>
      tpu.vector_store %arg8[%c0_17, %c0_18], %32 {strides = array<i32>} : memref<1x1xf32, #tpu.memory_space<vmem>>, vector<1x1xf32>,
    } else {
    }
    %c0 = arith.constant 0 : index
    %c0_1 = arith.constant 0 : index
    %3 = vector.load %arg1[%c0, %c0_1] : memref<32x16xf32, #tpu.memory_space<vmem>>, vector<32x16xf32>
    %c0_2 = arith.constant 0 : index
    %c0_3 = arith.constant 0 : index
    %4 = vector.load %arg2[%c0_2, %c0_3] : memref<32x1xf32, #tpu.memory_space<vmem>>, vector<32x1xf32>
    %c0_4 = arith.constant 0 : index
    %c0_5 = arith.constant 0 : index
    %5 = vector.load %arg3[%c0_4, %c0_5] : memref<32x1xi32, #tpu.memory_space<vmem>>, vector<32x1xi32>
    %cst = arith.constant dense<0xFF800000> : vector<32xf32>
    %6 = vector.multi_reduction <maximumf>, %3, %cst [1] : vector<32x16xf32> to vector<32xf32>
    %7 = vector.shape_cast %6 : vector<32xf32> to vector<32x1xf32>
    %8 = vector.broadcast %7 : vector<32x1xf32> to vector<32x16xf32>
    %9 = arith.subf %3, %8 : vector<32x16xf32>
    %10 = math.exp %9 : vector<32x16xf32>
    %cst_6 = arith.constant dense<0.000000e+00> : vector<32xf32>
    %11 = vector.multi_reduction <add>, %10, %cst_6 [1] : vector<32x16xf32> to vector<32xf32>
    %12 = vector.shape_cast %11 : vector<32xf32> to vector<32x1xf32>
    %13 = math.log %12 : vector<32x1xf32>
    %14 = arith.addf %13, %7 : vector<32x1xf32>
    %15 = tpu.iota {dimensions = array<i32: 1>} : vector<32x16xi32>
    %16 = vector.broadcast %5 : vector<32x1xi32> to vector<32x16xi32>
    %17 = arith.cmpi eq, %15, %16 : vector<32x16xi32>
    %cst_7 = arith.constant 0.000000e+00 : f32
    %18 = vector.broadcast %cst_7 : f32 to vector<32x16xf32>
    %19 = arith.select %17, %3, %18 : vector<32x16xi1>, vector<32x16xf32>
    %cst_8 = arith.constant dense<0.000000e+00> : vector<32xf32>
    %20 = vector.multi_reduction <add>, %19, %cst_8 [1] : vector<32x16xf32> to vector<32xf32>
    %21 = vector.shape_cast %20 : vector<32xf32> to vector<32x1xf32>
    %22 = arith.subf %14, %21 : vector<32x1xf32>
    %c0_9 = arith.constant 0 : index
    %c0_10 = arith.constant 0 : index
    %23 = vector.load %arg8[%c0_9, %c0_10] : memref<1x1xf32, #tpu.memory_space<vmem>>, vector<1x1xf32>
    %24 = arith.mulf %22, %4 : vector<32x1xf32>
    %cst_11 = arith.constant dense<0.000000e+00> : vector<1xf32>
    %25 = vector.multi_reduction <add>, %24, %cst_11 [0] : vector<32x1xf32> to vector<1xf32>
    %26 = vector.shape_cast %25 : vector<1xf32> to vector<1x1xf32>
    %27 = arith.addf %23, %26 : vector<1x1xf32>
    %c0_12 = arith.constant 0 : index
    %c0_13 = arith.constant 0 : index
    %28 = vector.load %arg8[%c0_12, %c0_13] : memref<1x1xf32, #tpu.memory_space<vmem>>, vector<1x1xf32>
    tpu.vector_store %arg8[%c0_12, %c0_13], %27 {strides = array<i32>} : memref<1x1xf32, #tpu.memory_space<vmem>>, vector<1x1xf32>,
    %c0_i32_14 = arith.constant 0 : i32
    %29 = arith.cmpi eq, %arg0, %c0_i32_14 : i32
    %30 = arith.extui %29 : i1 to i32
    %c0_i32_15 = arith.constant 0 : i32
    %31 = arith.cmpi ne, %30, %c0_i32_15 : i32
    scf.if %31 {
      %c0_16 = arith.constant 0 : index
      %c0_17 = arith.constant 0 : index
      %32 = vector.load %arg8[%c0_16, %c0_17] : memref<1x1xf32, #tpu.memory_space<vmem>>, vector<1x1xf32>
      %cst_18 = arith.constant 2.500000e-01 : f32
      %33 = vector.broadcast %cst_18 : f32 to vector<1x1xf32>
      %34 = arith.mulf %32, %33 : vector<1x1xf32>
      %c0_19 = arith.constant 0 : index
      %c0_20 = arith.constant 0 : index
      %35 = vector.load %arg6[%c0_19, %c0_20] : memref<1x1xf32, #tpu.memory_space<vmem>>, vector<1x1xf32>
      tpu.vector_store %arg6[%c0_19, %c0_20], %34 {strides = array<i32>} : memref<1x1xf32, #tpu.memory_space<vmem>>, vector<1x1xf32>,
      %c0_21 = arith.constant 0 : index
      %c0_22 = arith.constant 0 : index
      %36 = vector.load %arg4[%c0_21, %c0_22] : memref<8x4xf32, #tpu.memory_space<vmem>>, vector<8x4xf32>
      %c0_23 = arith.constant 0 : index
      %c0_24 = arith.constant 0 : index
      %37 = vector.load %arg5[%c0_23, %c0_24] : memref<8x4xf32, #tpu.memory_space<vmem>>, vector<8x4xf32>
      %cst_25 = arith.constant 0.000000e+00 : f32
      %38 = vector.broadcast %cst_25 : f32 to vector<8x4xf32>
      %39 = math.log %36 : vector<8x4xf32>
      %40 = arith.addf %38, %39 : vector<8x4xf32>
      %cst_26 = arith.constant 1.000000e+00 : f32
      %41 = vector.broadcast %cst_26 : f32 to vector<8x4xf32>
      %42 = arith.addf %36, %41 : vector<8x4xf32>
      %43 = math.log %42 : vector<8x4xf32>
      %44 = arith.addf %40, %43 : vector<8x4xf32>
      %cst_27 = arith.constant 1.000000e+00 : f32
      %45 = vector.broadcast %cst_27 : f32 to vector<8x4xf32>
      %46 = arith.addf %42, %45 : vector<8x4xf32>
      %47 = math.log %46 : vector<8x4xf32>
      %48 = arith.addf %44, %47 : vector<8x4xf32>
      %cst_28 = arith.constant 1.000000e+00 : f32
      %49 = vector.broadcast %cst_28 : f32 to vector<8x4xf32>
      %50 = arith.addf %46, %49 : vector<8x4xf32>
      %51 = math.log %50 : vector<8x4xf32>
      %52 = arith.addf %48, %51 : vector<8x4xf32>
      %cst_29 = arith.constant 1.000000e+00 : f32
      %53 = vector.broadcast %cst_29 : f32 to vector<8x4xf32>
      %54 = arith.addf %50, %53 : vector<8x4xf32>
      %55 = math.log %54 : vector<8x4xf32>
      %56 = arith.addf %52, %55 : vector<8x4xf32>
      %cst_30 = arith.constant 1.000000e+00 : f32
      %57 = vector.broadcast %cst_30 : f32 to vector<8x4xf32>
      %58 = arith.addf %54, %57 : vector<8x4xf32>
      %59 = math.log %58 : vector<8x4xf32>
      %60 = arith.addf %56, %59 : vector<8x4xf32>
      %cst_31 = arith.constant 1.000000e+00 : f32
      %61 = vector.broadcast %cst_31 : f32 to vector<8x4xf32>
      %62 = arith.addf %58, %61 : vector<8x4xf32>
      %63 = math.log %62 : vector<8x4xf32>
      %64 = arith.addf %60, %63 : vector<8x4xf32>
      %cst_32 = arith.constant 1.000000e+00 : f32
      %65 = vector.broadcast %cst_32 : f32 to vector<8x4xf32>
      %66 = arith.addf %62, %65 : vector<8x4xf32>
      %67 = math.log %66 : vector<8x4xf32>
      %68 = arith.addf %64, %67 : vector<8x4xf32>
      %cst_33 = arith.constant 1.000000e+00 : f32
      %69 = vector.broadcast %cst_33 : f32 to vector<8x4xf32>
      %70 = arith.addf %66, %69 : vector<8x4xf32>
      %cst_34 = arith.constant 1.000000e+00 : f32
      %71 = vector.broadcast %cst_34 : f32 to vector<8x4xf32>
      %72 = arith.divf %71, %70 : vector<8x4xf32>
      %73 = arith.mulf %72, %72 : vector<8x4xf32>
      %cst_35 = arith.constant -5.95238118E-4 : f32
      %74 = vector.broadcast %cst_35 : f32 to vector<8x4xf32>
      %75 = arith.mulf %73, %74 : vector<8x4xf32>
      %cst_36 = arith.constant 7.93650805E-4 : f32
      %76 = vector.broadcast %cst_36 : f32 to vector<8x4xf32>
      %77 = arith.addf %76, %75 : vector<8x4xf32>
      %78 = arith.mulf %73, %77 : vector<8x4xf32>
      %cst_37 = arith.constant -0.00277777785 : f32
      %79 = vector.broadcast %cst_37 : f32 to vector<8x4xf32>
      %80 = arith.addf %79, %78 : vector<8x4xf32>
      %81 = arith.mulf %73, %80 : vector<8x4xf32>
      %cst_38 = arith.constant 0.0833333358 : f32
      %82 = vector.broadcast %cst_38 : f32 to vector<8x4xf32>
      %83 = arith.addf %82, %81 : vector<8x4xf32>
      %84 = arith.mulf %72, %83 : vector<8x4xf32>
      %cst_39 = arith.constant 5.000000e-01 : f32
      %85 = vector.broadcast %cst_39 : f32 to vector<8x4xf32>
      %86 = arith.subf %70, %85 : vector<8x4xf32>
      %87 = math.log %70 : vector<8x4xf32>
      %88 = arith.mulf %86, %87 : vector<8x4xf32>
      %89 = arith.subf %88, %70 : vector<8x4xf32>
      %cst_40 = arith.constant 0.918938517 : f32
      %90 = vector.broadcast %cst_40 : f32 to vector<8x4xf32>
      %91 = arith.addf %89, %90 : vector<8x4xf32>
      %92 = arith.addf %91, %84 : vector<8x4xf32>
      %93 = arith.subf %92, %68 : vector<8x4xf32>
      %cst_41 = arith.constant 0.000000e+00 : f32
      %94 = vector.broadcast %cst_41 : f32 to vector<8x4xf32>
      %95 = math.log %37 : vector<8x4xf32>
      %96 = arith.addf %94, %95 : vector<8x4xf32>
      %cst_42 = arith.constant 1.000000e+00 : f32
      %97 = vector.broadcast %cst_42 : f32 to vector<8x4xf32>
      %98 = arith.addf %37, %97 : vector<8x4xf32>
      %99 = math.log %98 : vector<8x4xf32>
      %100 = arith.addf %96, %99 : vector<8x4xf32>
      %cst_43 = arith.constant 1.000000e+00 : f32
      %101 = vector.broadcast %cst_43 : f32 to vector<8x4xf32>
      %102 = arith.addf %98, %101 : vector<8x4xf32>
      %103 = math.log %102 : vector<8x4xf32>
      %104 = arith.addf %100, %103 : vector<8x4xf32>
      %cst_44 = arith.constant 1.000000e+00 : f32
      %105 = vector.broadcast %cst_44 : f32 to vector<8x4xf32>
      %106 = arith.addf %102, %105 : vector<8x4xf32>
      %107 = math.log %106 : vector<8x4xf32>
      %108 = arith.addf %104, %107 : vector<8x4xf32>
      %cst_45 = arith.constant 1.000000e+00 : f32
      %109 = vector.broadcast %cst_45 : f32 to vector<8x4xf32>
      %110 = arith.addf %106, %109 : vector<8x4xf32>
      %111 = math.log %110 : vector<8x4xf32>
      %112 = arith.addf %108, %111 : vector<8x4xf32>
      %cst_46 = arith.constant 1.000000e+00 : f32
      %113 = vector.broadcast %cst_46 : f32 to vector<8x4xf32>
      %114 = arith.addf %110, %113 : vector<8x4xf32>
      %115 = math.log %114 : vector<8x4xf32>
      %116 = arith.addf %112, %115 : vector<8x4xf32>
      %cst_47 = arith.constant 1.000000e+00 : f32
      %117 = vector.broadcast %cst_47 : f32 to vector<8x4xf32>
      %118 = arith.addf %114, %117 : vector<8x4xf32>
      %119 = math.log %118 : vector<8x4xf32>
      %120 = arith.addf %116, %119 : vector<8x4xf32>
      %cst_48 = arith.constant 1.000000e+00 : f32
      %121 = vector.broadcast %cst_48 : f32 to vector<8x4xf32>
      %122 = arith.addf %118, %121 : vector<8x4xf32>
      %123 = math.log %122 : vector<8x4xf32>
      %124 = arith.addf %120, %123 : vector<8x4xf32>
      %cst_49 = arith.constant 1.000000e+00 : f32
      %125 = vector.broadcast %cst_49 : f32 to vector<8x4xf32>
      %126 = arith.addf %122, %125 : vector<8x4xf32>
      %cst_50 = arith.constant 1.000000e+00 : f32
      %127 = vector.broadcast %cst_50 : f32 to vector<8x4xf32>
      %128 = arith.divf %127, %126 : vector<8x4xf32>
      %129 = arith.mulf %128, %128 : vector<8x4xf32>
      %cst_51 = arith.constant -5.95238118E-4 : f32
      %130 = vector.broadcast %cst_51 : f32 to vector<8x4xf32>
      %131 = arith.mulf %129, %130 : vector<8x4xf32>
      %cst_52 = arith.constant 7.93650805E-4 : f32
      %132 = vector.broadcast %cst_52 : f32 to vector<8x4xf32>
      %133 = arith.addf %132, %131 : vector<8x4xf32>
      %134 = arith.mulf %129, %133 : vector<8x4xf32>
      %cst_53 = arith.constant -0.00277777785 : f32
      %135 = vector.broadcast %cst_53 : f32 to vector<8x4xf32>
      %136 = arith.addf %135, %134 : vector<8x4xf32>
      %137 = arith.mulf %129, %136 : vector<8x4xf32>
      %cst_54 = arith.constant 0.0833333358 : f32
      %138 = vector.broadcast %cst_54 : f32 to vector<8x4xf32>
      %139 = arith.addf %138, %137 : vector<8x4xf32>
      %140 = arith.mulf %128, %139 : vector<8x4xf32>
      %cst_55 = arith.constant 5.000000e-01 : f32
      %141 = vector.broadcast %cst_55 : f32 to vector<8x4xf32>
      %142 = arith.subf %126, %141 : vector<8x4xf32>
      %143 = math.log %126 : vector<8x4xf32>
      %144 = arith.mulf %142, %143 : vector<8x4xf32>
      %145 = arith.subf %144, %126 : vector<8x4xf32>
      %cst_56 = arith.constant 0.918938517 : f32
      %146 = vector.broadcast %cst_56 : f32 to vector<8x4xf32>
      %147 = arith.addf %145, %146 : vector<8x4xf32>
      %148 = arith.addf %147, %140 : vector<8x4xf32>
      %149 = arith.subf %148, %124 : vector<8x4xf32>
      %150 = arith.addf %93, %149 : vector<8x4xf32>
      %151 = arith.addf %36, %37 : vector<8x4xf32>
      %cst_57 = arith.constant 0.000000e+00 : f32
      %152 = vector.broadcast %cst_57 : f32 to vector<8x4xf32>
      %153 = math.log %151 : vector<8x4xf32>
      %154 = arith.addf %152, %153 : vector<8x4xf32>
      %cst_58 = arith.constant 1.000000e+00 : f32
      %155 = vector.broadcast %cst_58 : f32 to vector<8x4xf32>
      %156 = arith.addf %151, %155 : vector<8x4xf32>
      %157 = math.log %156 : vector<8x4xf32>
      %158 = arith.addf %154, %157 : vector<8x4xf32>
      %cst_59 = arith.constant 1.000000e+00 : f32
      %159 = vector.broadcast %cst_59 : f32 to vector<8x4xf32>
      %160 = arith.addf %156, %159 : vector<8x4xf32>
      %161 = math.log %160 : vector<8x4xf32>
      %162 = arith.addf %158, %161 : vector<8x4xf32>
      %cst_60 = arith.constant 1.000000e+00 : f32
      %163 = vector.broadcast %cst_60 : f32 to vector<8x4xf32>
      %164 = arith.addf %160, %163 : vector<8x4xf32>
      %165 = math.log %164 : vector<8x4xf32>
      %166 = arith.addf %162, %165 : vector<8x4xf32>
      %cst_61 = arith.constant 1.000000e+00 : f32
      %167 = vector.broadcast %cst_61 : f32 to vector<8x4xf32>
      %168 = arith.addf %164, %167 : vector<8x4xf32>
      %169 = math.log %168 : vector<8x4xf32>
      %170 = arith.addf %166, %169 : vector<8x4xf32>
      %cst_62 = arith.constant 1.000000e+00 : f32
      %171 = vector.broadcast %cst_62 : f32 to vector<8x4xf32>
      %172 = arith.addf %168, %171 : vector<8x4xf32>
      %173 = math.log %172 : vector<8x4xf32>
      %174 = arith.addf %170, %173 : vector<8x4xf32>
      %cst_63 = arith.constant 1.000000e+00 : f32
      %175 = vector.broadcast %cst_63 : f32 to vector<8x4xf32>
      %176 = arith.addf %172, %175 : vector<8x4xf32>
      %177 = math.log %176 : vector<8x4xf32>
      %178 = arith.addf %174, %177 : vector<8x4xf32>
      %cst_64 = arith.constant 1.000000e+00 : f32
      %179 = vector.broadcast %cst_64 : f32 to vector<8x4xf32>
      %180 = arith.addf %176, %179 : vector<8x4xf32>
      %181 = math.log %180 : vector<8x4xf32>
      %182 = arith.addf %178, %181 : vector<8x4xf32>
      %cst_65 = arith.constant 1.000000e+00 : f32
      %183 = vector.broadcast %cst_65 : f32 to vector<8x4xf32>
      %184 = arith.addf %180, %183 : vector<8x4xf32>
      %cst_66 = arith.constant 1.000000e+00 : f32
      %185 = vector.broadcast %cst_66 : f32 to vector<8x4xf32>
      %186 = arith.divf %185, %184 : vector<8x4xf32>
      %187 = arith.mulf %186, %186 : vector<8x4xf32>
      %cst_67 = arith.constant -5.95238118E-4 : f32
      %188 = vector.broadcast %cst_67 : f32 to vector<8x4xf32>
      %189 = arith.mulf %187, %188 : vector<8x4xf32>
      %cst_68 = arith.constant 7.93650805E-4 : f32
      %190 = vector.broadcast %cst_68 : f32 to vector<8x4xf32>
      %191 = arith.addf %190, %189 : vector<8x4xf32>
      %192 = arith.mulf %187, %191 : vector<8x4xf32>
      %cst_69 = arith.constant -0.00277777785 : f32
      %193 = vector.broadcast %cst_69 : f32 to vector<8x4xf32>
      %194 = arith.addf %193, %192 : vector<8x4xf32>
      %195 = arith.mulf %187, %194 : vector<8x4xf32>
      %cst_70 = arith.constant 0.0833333358 : f32
      %196 = vector.broadcast %cst_70 : f32 to vector<8x4xf32>
      %197 = arith.addf %196, %195 : vector<8x4xf32>
      %198 = arith.mulf %186, %197 : vector<8x4xf32>
      %cst_71 = arith.constant 5.000000e-01 : f32
      %199 = vector.broadcast %cst_71 : f32 to vector<8x4xf32>
      %200 = arith.subf %184, %199 : vector<8x4xf32>
      %201 = math.log %184 : vector<8x4xf32>
      %202 = arith.mulf %200, %201 : vector<8x4xf32>
      %203 = arith.subf %202, %184 : vector<8x4xf32>
      %cst_72 = arith.constant 0.918938517 : f32
      %204 = vector.broadcast %cst_72 : f32 to vector<8x4xf32>
      %205 = arith.addf %203, %204 : vector<8x4xf32>
      %206 = arith.addf %205, %198 : vector<8x4xf32>
      %207 = arith.subf %206, %182 : vector<8x4xf32>
      %208 = arith.subf %150, %207 : vector<8x4xf32>
      %cst_73 = arith.constant -2.48490667 : f32
      %209 = vector.broadcast %cst_73 : f32 to vector<8x4xf32>
      %210 = arith.subf %209, %208 : vector<8x4xf32>
      %cst_74 = arith.constant 2.000000e+00 : f32
      %211 = vector.broadcast %cst_74 : f32 to vector<8x4xf32>
      %212 = arith.subf %36, %211 : vector<8x4xf32>
      %cst_75 = arith.constant 0.000000e+00 : f32
      %213 = vector.broadcast %cst_75 : f32 to vector<8x4xf32>
      %cst_76 = arith.constant 1.000000e+00 : f32
      %214 = vector.broadcast %cst_76 : f32 to vector<8x4xf32>
      %215 = arith.divf %214, %36 : vector<8x4xf32>
      %216 = arith.addf %213, %215 : vector<8x4xf32>
      %cst_77 = arith.constant 1.000000e+00 : f32
      %217 = vector.broadcast %cst_77 : f32 to vector<8x4xf32>
      %218 = arith.addf %36, %217 : vector<8x4xf32>
      %cst_78 = arith.constant 1.000000e+00 : f32
      %219 = vector.broadcast %cst_78 : f32 to vector<8x4xf32>
      %220 = arith.divf %219, %218 : vector<8x4xf32>
      %221 = arith.addf %216, %220 : vector<8x4xf32>
      %cst_79 = arith.constant 1.000000e+00 : f32
      %222 = vector.broadcast %cst_79 : f32 to vector<8x4xf32>
      %223 = arith.addf %218, %222 : vector<8x4xf32>
      %cst_80 = arith.constant 1.000000e+00 : f32
      %224 = vector.broadcast %cst_80 : f32 to vector<8x4xf32>
      %225 = arith.divf %224, %223 : vector<8x4xf32>
      %226 = arith.addf %221, %225 : vector<8x4xf32>
      %cst_81 = arith.constant 1.000000e+00 : f32
      %227 = vector.broadcast %cst_81 : f32 to vector<8x4xf32>
      %228 = arith.addf %223, %227 : vector<8x4xf32>
      %cst_82 = arith.constant 1.000000e+00 : f32
      %229 = vector.broadcast %cst_82 : f32 to vector<8x4xf32>
      %230 = arith.divf %229, %228 : vector<8x4xf32>
      %231 = arith.addf %226, %230 : vector<8x4xf32>
      %cst_83 = arith.constant 1.000000e+00 : f32
      %232 = vector.broadcast %cst_83 : f32 to vector<8x4xf32>
      %233 = arith.addf %228, %232 : vector<8x4xf32>
      %cst_84 = arith.constant 1.000000e+00 : f32
      %234 = vector.broadcast %cst_84 : f32 to vector<8x4xf32>
      %235 = arith.divf %234, %233 : vector<8x4xf32>
      %236 = arith.addf %231, %235 : vector<8x4xf32>
      %cst_85 = arith.constant 1.000000e+00 : f32
      %237 = vector.broadcast %cst_85 : f32 to vector<8x4xf32>
      %238 = arith.addf %233, %237 : vector<8x4xf32>
      %cst_86 = arith.constant 1.000000e+00 : f32
      %239 = vector.broadcast %cst_86 : f32 to vector<8x4xf32>
      %240 = arith.divf %239, %238 : vector<8x4xf32>
      %241 = arith.addf %236, %240 : vector<8x4xf32>
      %cst_87 = arith.constant 1.000000e+00 : f32
      %242 = vector.broadcast %cst_87 : f32 to vector<8x4xf32>
      %243 = arith.addf %238, %242 : vector<8x4xf32>
      %cst_88 = arith.constant 1.000000e+00 : f32
      %244 = vector.broadcast %cst_88 : f32 to vector<8x4xf32>
      %245 = arith.divf %244, %243 : vector<8x4xf32>
      %246 = arith.addf %241, %245 : vector<8x4xf32>
      %cst_89 = arith.constant 1.000000e+00 : f32
      %247 = vector.broadcast %cst_89 : f32 to vector<8x4xf32>
      %248 = arith.addf %243, %247 : vector<8x4xf32>
      %cst_90 = arith.constant 1.000000e+00 : f32
      %249 = vector.broadcast %cst_90 : f32 to vector<8x4xf32>
      %250 = arith.divf %249, %248 : vector<8x4xf32>
      %251 = arith.addf %246, %250 : vector<8x4xf32>
      %cst_91 = arith.constant 1.000000e+00 : f32
      %252 = vector.broadcast %cst_91 : f32 to vector<8x4xf32>
      %253 = arith.addf %248, %252 : vector<8x4xf32>
      %cst_92 = arith.constant 1.000000e+00 : f32
      %254 = vector.broadcast %cst_92 : f32 to vector<8x4xf32>
      %255 = arith.divf %254, %253 : vector<8x4xf32>
      %256 = arith.mulf %255, %255 : vector<8x4xf32>
      %cst_93 = arith.constant 0.0039682542 : f32
      %257 = vector.broadcast %cst_93 : f32 to vector<8x4xf32>
      %258 = arith.mulf %256, %257 : vector<8x4xf32>
      %cst_94 = arith.constant 0.00833333377 : f32
      %259 = vector.broadcast %cst_94 : f32 to vector<8x4xf32>
      %260 = arith.subf %259, %258 : vector<8x4xf32>
      %261 = arith.mulf %256, %260 : vector<8x4xf32>
      %cst_95 = arith.constant 0.0833333358 : f32
      %262 = vector.broadcast %cst_95 : f32 to vector<8x4xf32>
      %263 = arith.subf %262, %261 : vector<8x4xf32>
      %264 = arith.mulf %256, %263 : vector<8x4xf32>
      %265 = math.log %253 : vector<8x4xf32>
      %cst_96 = arith.constant 5.000000e-01 : f32
      %266 = vector.broadcast %cst_96 : f32 to vector<8x4xf32>
      %267 = arith.mulf %266, %255 : vector<8x4xf32>
      %268 = arith.subf %265, %267 : vector<8x4xf32>
      %269 = arith.subf %268, %264 : vector<8x4xf32>
      %270 = arith.subf %269, %251 : vector<8x4xf32>
      %271 = arith.mulf %212, %270 : vector<8x4xf32>
      %272 = arith.addf %210, %271 : vector<8x4xf32>
      %cst_97 = arith.constant 3.000000e+00 : f32
      %273 = vector.broadcast %cst_97 : f32 to vector<8x4xf32>
      %274 = arith.subf %37, %273 : vector<8x4xf32>
      %cst_98 = arith.constant 0.000000e+00 : f32
      %275 = vector.broadcast %cst_98 : f32 to vector<8x4xf32>
      %cst_99 = arith.constant 1.000000e+00 : f32
      %276 = vector.broadcast %cst_99 : f32 to vector<8x4xf32>
      %277 = arith.divf %276, %37 : vector<8x4xf32>
      %278 = arith.addf %275, %277 : vector<8x4xf32>
      %cst_100 = arith.constant 1.000000e+00 : f32
      %279 = vector.broadcast %cst_100 : f32 to vector<8x4xf32>
      %280 = arith.addf %37, %279 : vector<8x4xf32>
      %cst_101 = arith.constant 1.000000e+00 : f32
      %281 = vector.broadcast %cst_101 : f32 to vector<8x4xf32>
      %282 = arith.divf %281, %280 : vector<8x4xf32>
      %283 = arith.addf %278, %282 : vector<8x4xf32>
      %cst_102 = arith.constant 1.000000e+00 : f32
      %284 = vector.broadcast %cst_102 : f32 to vector<8x4xf32>
      %285 = arith.addf %280, %284 : vector<8x4xf32>
      %cst_103 = arith.constant 1.000000e+00 : f32
      %286 = vector.broadcast %cst_103 : f32 to vector<8x4xf32>
      %287 = arith.divf %286, %285 : vector<8x4xf32>
      %288 = arith.addf %283, %287 : vector<8x4xf32>
      %cst_104 = arith.constant 1.000000e+00 : f32
      %289 = vector.broadcast %cst_104 : f32 to vector<8x4xf32>
      %290 = arith.addf %285, %289 : vector<8x4xf32>
      %cst_105 = arith.constant 1.000000e+00 : f32
      %291 = vector.broadcast %cst_105 : f32 to vector<8x4xf32>
      %292 = arith.divf %291, %290 : vector<8x4xf32>
      %293 = arith.addf %288, %292 : vector<8x4xf32>
      %cst_106 = arith.constant 1.000000e+00 : f32
      %294 = vector.broadcast %cst_106 : f32 to vector<8x4xf32>
      %295 = arith.addf %290, %294 : vector<8x4xf32>
      %cst_107 = arith.constant 1.000000e+00 : f32
      %296 = vector.broadcast %cst_107 : f32 to vector<8x4xf32>
      %297 = arith.divf %296, %295 : vector<8x4xf32>
      %298 = arith.addf %293, %297 : vector<8x4xf32>
      %cst_108 = arith.constant 1.000000e+00 : f32
      %299 = vector.broadcast %cst_108 : f32 to vector<8x4xf32>
      %300 = arith.addf %295, %299 : vector<8x4xf32>
      %cst_109 = arith.constant 1.000000e+00 : f32
      %301 = vector.broadcast %cst_109 : f32 to vector<8x4xf32>
      %302 = arith.divf %301, %300 : vector<8x4xf32>
      %303 = arith.addf %298, %302 : vector<8x4xf32>
      %cst_110 = arith.constant 1.000000e+00 : f32
      %304 = vector.broadcast %cst_110 : f32 to vector<8x4xf32>
      %305 = arith.addf %300, %304 : vector<8x4xf32>
      %cst_111 = arith.constant 1.000000e+00 : f32
      %306 = vector.broadcast %cst_111 : f32 to vector<8x4xf32>
      %307 = arith.divf %306, %305 : vector<8x4xf32>
      %308 = arith.addf %303, %307 : vector<8x4xf32>
      %cst_112 = arith.constant 1.000000e+00 : f32
      %309 = vector.broadcast %cst_112 : f32 to vector<8x4xf32>
      %310 = arith.addf %305, %309 : vector<8x4xf32>
      %cst_113 = arith.constant 1.000000e+00 : f32
      %311 = vector.broadcast %cst_113 : f32 to vector<8x4xf32>
      %312 = arith.divf %311, %310 : vector<8x4xf32>
      %313 = arith.addf %308, %312 : vector<8x4xf32>
      %cst_114 = arith.constant 1.000000e+00 : f32
      %314 = vector.broadcast %cst_114 : f32 to vector<8x4xf32>
      %315 = arith.addf %310, %314 : vector<8x4xf32>
      %cst_115 = arith.constant 1.000000e+00 : f32
      %316 = vector.broadcast %cst_115 : f32 to vector<8x4xf32>
      %317 = arith.divf %316, %315 : vector<8x4xf32>
      %318 = arith.mulf %317, %317 : vector<8x4xf32>
      %cst_116 = arith.constant 0.0039682542 : f32
      %319 = vector.broadcast %cst_116 : f32 to vector<8x4xf32>
      %320 = arith.mulf %318, %319 : vector<8x4xf32>
      %cst_117 = arith.constant 0.00833333377 : f32
      %321 = vector.broadcast %cst_117 : f32 to vector<8x4xf32>
      %322 = arith.subf %321, %320 : vector<8x4xf32>
      %323 = arith.mulf %318, %322 : vector<8x4xf32>
      %cst_118 = arith.constant 0.0833333358 : f32
      %324 = vector.broadcast %cst_118 : f32 to vector<8x4xf32>
      %325 = arith.subf %324, %323 : vector<8x4xf32>
      %326 = arith.mulf %318, %325 : vector<8x4xf32>
      %327 = math.log %315 : vector<8x4xf32>
      %cst_119 = arith.constant 5.000000e-01 : f32
      %328 = vector.broadcast %cst_119 : f32 to vector<8x4xf32>
      %329 = arith.mulf %328, %317 : vector<8x4xf32>
      %330 = arith.subf %327, %329 : vector<8x4xf32>
      %331 = arith.subf %330, %326 : vector<8x4xf32>
      %332 = arith.subf %331, %313 : vector<8x4xf32>
      %333 = arith.mulf %274, %332 : vector<8x4xf32>
      %334 = arith.addf %272, %333 : vector<8x4xf32>
      %cst_120 = arith.constant 2.000000e+00 : f32
      %335 = vector.broadcast %cst_120 : f32 to vector<8x4xf32>
      %336 = arith.subf %335, %36 : vector<8x4xf32>
      %cst_121 = arith.constant 3.000000e+00 : f32
      %337 = vector.broadcast %cst_121 : f32 to vector<8x4xf32>
      %338 = arith.addf %336, %337 : vector<8x4xf32>
      %339 = arith.subf %338, %37 : vector<8x4xf32>
      %340 = arith.addf %36, %37 : vector<8x4xf32>
      %cst_122 = arith.constant 0.000000e+00 : f32
      %341 = vector.broadcast %cst_122 : f32 to vector<8x4xf32>
      %cst_123 = arith.constant 1.000000e+00 : f32
      %342 = vector.broadcast %cst_123 : f32 to vector<8x4xf32>
      %343 = arith.divf %342, %340 : vector<8x4xf32>
      %344 = arith.addf %341, %343 : vector<8x4xf32>
      %cst_124 = arith.constant 1.000000e+00 : f32
      %345 = vector.broadcast %cst_124 : f32 to vector<8x4xf32>
      %346 = arith.addf %340, %345 : vector<8x4xf32>
      %cst_125 = arith.constant 1.000000e+00 : f32
      %347 = vector.broadcast %cst_125 : f32 to vector<8x4xf32>
      %348 = arith.divf %347, %346 : vector<8x4xf32>
      %349 = arith.addf %344, %348 : vector<8x4xf32>
      %cst_126 = arith.constant 1.000000e+00 : f32
      %350 = vector.broadcast %cst_126 : f32 to vector<8x4xf32>
      %351 = arith.addf %346, %350 : vector<8x4xf32>
      %cst_127 = arith.constant 1.000000e+00 : f32
      %352 = vector.broadcast %cst_127 : f32 to vector<8x4xf32>
      %353 = arith.divf %352, %351 : vector<8x4xf32>
      %354 = arith.addf %349, %353 : vector<8x4xf32>
      %cst_128 = arith.constant 1.000000e+00 : f32
      %355 = vector.broadcast %cst_128 : f32 to vector<8x4xf32>
      %356 = arith.addf %351, %355 : vector<8x4xf32>
      %cst_129 = arith.constant 1.000000e+00 : f32
      %357 = vector.broadcast %cst_129 : f32 to vector<8x4xf32>
      %358 = arith.divf %357, %356 : vector<8x4xf32>
      %359 = arith.addf %354, %358 : vector<8x4xf32>
      %cst_130 = arith.constant 1.000000e+00 : f32
      %360 = vector.broadcast %cst_130 : f32 to vector<8x4xf32>
      %361 = arith.addf %356, %360 : vector<8x4xf32>
      %cst_131 = arith.constant 1.000000e+00 : f32
      %362 = vector.broadcast %cst_131 : f32 to vector<8x4xf32>
      %363 = arith.divf %362, %361 : vector<8x4xf32>
      %364 = arith.addf %359, %363 : vector<8x4xf32>
      %cst_132 = arith.constant 1.000000e+00 : f32
      %365 = vector.broadcast %cst_132 : f32 to vector<8x4xf32>
      %366 = arith.addf %361, %365 : vector<8x4xf32>
      %cst_133 = arith.constant 1.000000e+00 : f32
      %367 = vector.broadcast %cst_133 : f32 to vector<8x4xf32>
      %368 = arith.divf %367, %366 : vector<8x4xf32>
      %369 = arith.addf %364, %368 : vector<8x4xf32>
      %cst_134 = arith.constant 1.000000e+00 : f32
      %370 = vector.broadcast %cst_134 : f32 to vector<8x4xf32>
      %371 = arith.addf %366, %370 : vector<8x4xf32>
      %cst_135 = arith.constant 1.000000e+00 : f32
      %372 = vector.broadcast %cst_135 : f32 to vector<8x4xf32>
      %373 = arith.divf %372, %371 : vector<8x4xf32>
      %374 = arith.addf %369, %373 : vector<8x4xf32>
      %cst_136 = arith.constant 1.000000e+00 : f32
      %375 = vector.broadcast %cst_136 : f32 to vector<8x4xf32>
      %376 = arith.addf %371, %375 : vector<8x4xf32>
      %cst_137 = arith.constant 1.000000e+00 : f32
      %377 = vector.broadcast %cst_137 : f32 to vector<8x4xf32>
      %378 = arith.divf %377, %376 : vector<8x4xf32>
      %379 = arith.addf %374, %378 : vector<8x4xf32>
      %cst_138 = arith.constant 1.000000e+00 : f32
      %380 = vector.broadcast %cst_138 : f32 to vector<8x4xf32>
      %381 = arith.addf %376, %380 : vector<8x4xf32>
      %cst_139 = arith.constant 1.000000e+00 : f32
      %382 = vector.broadcast %cst_139 : f32 to vector<8x4xf32>
      %383 = arith.divf %382, %381 : vector<8x4xf32>
      %384 = arith.mulf %383, %383 : vector<8x4xf32>
      %cst_140 = arith.constant 0.0039682542 : f32
      %385 = vector.broadcast %cst_140 : f32 to vector<8x4xf32>
      %386 = arith.mulf %384, %385 : vector<8x4xf32>
      %cst_141 = arith.constant 0.00833333377 : f32
      %387 = vector.broadcast %cst_141 : f32 to vector<8x4xf32>
      %388 = arith.subf %387, %386 : vector<8x4xf32>
      %389 = arith.mulf %384, %388 : vector<8x4xf32>
      %cst_142 = arith.constant 0.0833333358 : f32
      %390 = vector.broadcast %cst_142 : f32 to vector<8x4xf32>
      %391 = arith.subf %390, %389 : vector<8x4xf32>
      %392 = arith.mulf %384, %391 : vector<8x4xf32>
      %393 = math.log %381 : vector<8x4xf32>
      %cst_143 = arith.constant 5.000000e-01 : f32
      %394 = vector.broadcast %cst_143 : f32 to vector<8x4xf32>
      %395 = arith.mulf %394, %383 : vector<8x4xf32>
      %396 = arith.subf %393, %395 : vector<8x4xf32>
      %397 = arith.subf %396, %392 : vector<8x4xf32>
      %398 = arith.subf %397, %379 : vector<8x4xf32>
      %399 = arith.mulf %339, %398 : vector<8x4xf32>
      %400 = arith.addf %334, %399 : vector<8x4xf32>
      %cst_144 = arith.constant dense<0.000000e+00> : vector<8xf32>
      %401 = vector.multi_reduction <add>, %400, %cst_144 [1] : vector<8x4xf32> to vector<8xf32>
      %402 = vector.shape_cast %401 : vector<8xf32> to vector<8x1xf32>
      %cst_145 = arith.constant dense<0.000000e+00> : vector<1xf32>
      %403 = vector.multi_reduction <add>, %402, %cst_145 [0] : vector<8x1xf32> to vector<1xf32>
      %404 = vector.shape_cast %403 : vector<1xf32> to vector<1x1xf32>
      %cst_146 = arith.constant 2.500000e-01 : f32
      %405 = vector.broadcast %cst_146 : f32 to vector<1x1xf32>
      %406 = arith.mulf %404, %405 : vector<1x1xf32>
      %c0_147 = arith.constant 0 : index
      %c0_148 = arith.constant 0 : index
      %407 = vector.load %arg7[%c0_147, %c0_148] : memref<1x1xf32, #tpu.memory_space<vmem>>, vector<1x1xf32>
      tpu.vector_store %arg7[%c0_147, %c0_148], %406 {strides = array<i32>} : memref<1x1xf32, #tpu.memory_space<vmem>>, vector<1x1xf32>,
    } else {
    }
    return
  }
  func.func @transform_0(%arg0: i32) -> (i32, i32) {
    %c0_i32 = arith.constant 0 : i32
    %c0_i32_0 = arith.constant 0 : i32
    return %arg0, %c0_i32 : i32, i32
  }
  func.func @transform_1(%arg0: i32) -> (i32, i32) {
    %c0_i32 = arith.constant 0 : i32
    %c0_i32_0 = arith.constant 0 : i32
    return %arg0, %c0_i32 : i32, i32
  }
  func.func @transform_2(%arg0: i32) -> (i32, i32) {
    %c0_i32 = arith.constant 0 : i32
    %c0_i32_0 = arith.constant 0 : i32
    return %arg0, %c0_i32 : i32, i32
  }
  func.func @transform_3(%arg0: i32) -> (i32, i32) {
    %c0_i32 = arith.constant 0 : i32
    %c0_i32_0 = arith.constant 0 : i32
    %c0_i32_1 = arith.constant 0 : i32
    return %c0_i32, %c0_i32_0 : i32, i32
  }
  func.func @transform_4(%arg0: i32) -> (i32, i32) {
    %c0_i32 = arith.constant 0 : i32
    %c0_i32_0 = arith.constant 0 : i32
    %c0_i32_1 = arith.constant 0 : i32
    return %c0_i32, %c0_i32_0 : i32, i32
  }
  func.func @transform_5(%arg0: i32) -> (i32, i32) {
    %c0_i32 = arith.constant 0 : i32
    %c0_i32_0 = arith.constant 0 : i32
    %c0_i32_1 = arith.constant 0 : i32
    return %c0_i32, %c0_i32_0 : i32, i32
  }
  func.func @transform_6(%arg0: i32) -> (i32, i32) {
    %c0_i32 = arith.constant 0 : i32
    %c0_i32_0 = arith.constant 0 : i32
    %c0_i32_1 = arith.constant 0 : i32
    return %c0_i32, %c0_i32_0 : i32, i32
  }
}

</mosaic_0001>

<llo_original>
// kernel: tpu_custom_call.1
$region0: #{tpu_custom_call.1}
  #allocation0 [shape = 'u32[]', space=smem, size = 0x4, offset = 0x4, fixed_abs, tag = 'smem constant byte address 0x4 - core index']
  #allocation1 [shape = 'u32[144,128]{1,0:T(1,128)}', space=vmem, size = 0x12000, scoped, tag = 'internal scratch']
  #allocation2 [shape = 'f32[1,1]{1,0:T(1,128)}', space=vmem, size = 0x200, scoped, tag = 'scratch operand']
  %s0 = inlined_call_operand.vmem [shape: f32[32,16], index: 0, kind: input, shape index: {}]
  %s1 = inlined_call_operand.vmem [shape: f32[32,1], index: 1, kind: input, shape index: {}]
  %s2 = inlined_call_operand.vmem [shape: s32[32,1], index: 2, kind: input, shape index: {}]
  %s3 = inlined_call_operand.vmem [shape: f32[8,4], index: 3, kind: input, shape index: {}]
  %s4 = inlined_call_operand.vmem [shape: f32[8,4], index: 4, kind: input, shape index: {}]
  %s5 = inlined_call_operand.hbm [shape: f32[1,1], index: 5, kind: output, shape index: {0}]
  %s6 = inlined_call_operand.hbm [shape: f32[1,1], index: 6, kind: output, shape index: {1}]
  %7 = xla_tuple %s5, %s6
  %s8 = sld [smem:[#allocation0]]
  $region46: #{tpu_custom_call.1} parent=0
    _
  %s10 = ssub.s32 1, %s8
  %s11 = scalar_select 0, %s10, %s8
  $region1: #{tpu_custom_call.1} parent=0
    #allocation3 [shape = 'u8[512]{0}', space=vmem, size = 0x400, scoped, tag = 'output window, operand 0, single buffered']
    #allocation4 [shape = 's32[1]{0}', space=sflag, size = 0x4, scoped, tag = 'scoped memory for tpu_custom_call.1']
    #allocation5 [shape = 'u8[512]{0}', space=vmem, size = 0x400, scoped, tag = 'output window, operand 1, single buffered']
    #allocation6 [shape = 's32[1]{0}', space=sflag, size = 0x4, scoped, tag = 'scoped memory for tpu_custom_call.1']
    %12 = vsyncpa [#allocation4], 0
    %13 = vsyncpa [#allocation6], 0
    // Predicated region
    $region2: #{tpu_custom_call.1} parent=1 // pred_check
      _
    $region3: #{tpu_custom_call.1} parent=1 // pred_check_branch
      %15 = sbr.rel (0) target = $region5
    $region4: #{tpu_custom_call.1} parent=1 // pred_region
      _
    $region5: #{tpu_custom_call.1} parent=1 // pred_fallthru
      _
    // Predicated region
    $region6: #{tpu_custom_call.1} parent=1 // pred_check
      _
    $region7: #{tpu_custom_call.1} parent=1 // pred_check_branch
      %17 = sbr.rel (0) target = $region9
    $region8: #{tpu_custom_call.1} parent=1 // pred_region
      _
    $region9: #{tpu_custom_call.1} parent=1 // pred_fallthru
      _
    // Predicated region
    $region10: #{tpu_custom_call.1} parent=1 // pred_check
      _
    $region11: #{tpu_custom_call.1} parent=1 // pred_check_branch
      %19 = sbr.rel (0) target = $region13
    $region12: #{tpu_custom_call.1} parent=1 // pred_region
      _
    $region13: #{tpu_custom_call.1} parent=1 // pred_fallthru
      _
    // Predicated region
    $region14: #{tpu_custom_call.1} parent=1 // pred_check
      _
    $region15: #{tpu_custom_call.1} parent=1 // pred_check_branch
      %21 = sbr.rel (0) target = $region17
    $region16: #{tpu_custom_call.1} parent=1 // pred_region
      _
    $region17: #{tpu_custom_call.1} parent=1 // pred_fallthru
      _
    // Predicated region
    $region18: #{tpu_custom_call.1} parent=1 // pred_check
      _
    $region19: #{tpu_custom_call.1} parent=1 // pred_check_branch
      %23 = sbr.rel (0) target = $region21
    $region20: #{tpu_custom_call.1} parent=1 // pred_region
      _
    $region21: #{tpu_custom_call.1} parent=1 // pred_fallthru
      _
    %p24 = scmp.eq.s32.totalorder 0, 0
    // Predicated region
    $region22: #{tpu_custom_call.1} parent=1 // pred_check
      %p25 = pneg %p24
    $region23: #{tpu_custom_call.1} parent=1 // pred_check_branch
      %27 = sbr.rel (%p25) target = $region25
    $region24: #{tpu_custom_call.1} parent=1 // pred_region
      %vm28 = vcmask 0
      %29 = vst.msk [vmem:[#allocation2] sm:$0x1] %vm28, 0.0
    $region25: #{tpu_custom_call.1} parent=1 // pred_fallthru
      _
    %v30 = vld [vmem:[%s0] sm:$0xff]
    %v31 = vld [vmem:[%s0 + $0x8] sm:$0xff]
    %v32 = vld [vmem:[%s0 + $0x10] sm:$0xff]
    %v33 = vld [vmem:[%s0 + $0x18] sm:$0xff]
    %v34 = vld [vmem:[%s1] sm:$0xff]
    %v35 = vld [vmem:[%s1 + $0x8] sm:$0xff]
    %v36 = vld [vmem:[%s1 + $0x10] sm:$0xff]
    %v37 = vld [vmem:[%s1 + $0x18] sm:$0xff]
    %v38 = vld [vmem:[%s2] sm:$0xff]
    %v39 = vld [vmem:[%s2 + $0x8] sm:$0xff]
    %v40 = vld [vmem:[%s2 + $0x10] sm:$0xff]
    %v41 = vld [vmem:[%s2 + $0x18] sm:$0xff]
    %vm42 = vcmask 130048
    %v43 = vsel %vm42, %v30, -inf
    %44 = vmax.xlane.f32.xlu0 %v43
    %v45 = vpop.xlane.xlu0 %44
    %v46 = vsel %vm42, %v31, -inf
    %47 = vmax.xlane.f32.xlu0 %v46
    %v48 = vpop.xlane.xlu0 %47
    %v49 = vsel %vm42, %v32, -inf
    %50 = vmax.xlane.f32.xlu0 %v49
    %v51 = vpop.xlane.xlu0 %50
    %v52 = vsel %vm42, %v33, -inf
    %53 = vmax.xlane.f32.xlu0 %v52
    %v54 = vpop.xlane.xlu0 %53
    %v55 = vsub.f32 %v30, %v45
    %v56 = vsub.f32 %v31, %v48
    %v57 = vsub.f32 %v32, %v51
    %v58 = vsub.f32 %v33, %v54
    %v59 = vmul.f32 %v55, 1.442695
    %v60 = vpow.pop %v59
    %v61 = vmul.f32 %v56, 1.442695
    %v62 = vpow.pop %v61
    %v63 = vmul.f32 %v57, 1.442695
    %v64 = vpow.pop %v63
    %v65 = vmul.f32 %v58, 1.442695
    %v66 = vpow.pop %v65
    %v67 = vsel %vm42, %v60, 0.0
    %68 = vadd.xlane.f32.xlu0 %v67
    %v69 = vpop.xlane.xlu0 %68
    %v70 = vsel %vm42, %v62, 0.0
    %71 = vadd.xlane.f32.xlu0 %v70
    %v72 = vpop.xlane.xlu0 %71
    %v73 = vsel %vm42, %v64, 0.0
    %74 = vadd.xlane.f32.xlu0 %v73
    %v75 = vpop.xlane.xlu0 %74
    %v76 = vsel %vm42, %v66, 0.0
    %77 = vadd.xlane.f32.xlu0 %v76
    %v78 = vpop.xlane.xlu0 %77
    %v79 = vlog2.pop %v69
    %v80 = vmul.f32 %v79, 0.6931472
    %v81 = vlog2.pop %v72
    %v82 = vmul.f32 %v81, 0.6931472
    %v83 = vlog2.pop %v75
    %v84 = vmul.f32 %v83, 0.6931472
    %v85 = vlog2.pop %v78
    %v86 = vmul.f32 %v85, 0.6931472
    %v87 = vadd.f32 %v80, %v45
    %v88 = vadd.f32 %v82, %v48
    %v89 = vadd.f32 %v84, %v51
    %v90 = vadd.f32 %v86, %v54
    %v91 = vlaneseq
    %v92 = vand.u32 %v91, 127
    %93 = vset.pattern.permute.xlu0 0
    %94 = vperm.xlu0 %93, %v38
    %v95 = vpop.permute.xlu0 %94
    %96 = vset.pattern.permute.xlu0 0
    %97 = vperm.xlu0 %96, %v39
    %v98 = vpop.permute.xlu0 %97
    %99 = vset.pattern.permute.xlu0 0
    %100 = vperm.xlu0 %99, %v40
    %v101 = vpop.permute.xlu0 %100
    %102 = vset.pattern.permute.xlu0 0
    %103 = vperm.xlu0 %102, %v41
    %v104 = vpop.permute.xlu0 %103
    %vm105 = vcmp.eq.s32.totalorder %v92, %v95
    %vm106 = vcmp.eq.s32.totalorder %v92, %v98
    %vm107 = vcmp.eq.s32.totalorder %v92, %v101
    %vm108 = vcmp.eq.s32.totalorder %v92, %v104
    %v109 = vsel %vm105, %v30, 0.0
    %v110 = vsel %vm106, %v31, 0.0
    %v111 = vsel %vm107, %v32, 0.0
    %v112 = vsel %vm108, %v33, 0.0
    %v113 = vsel %vm42, %v109, 0.0
    %114 = vadd.xlane.f32.xlu0 %v113
    %v115 = vpop.xlane.xlu0 %114
    %v116 = vsel %vm42, %v110, 0.0
    %117 = vadd.xlane.f32.xlu0 %v116
    %v118 = vpop.xlane.xlu0 %117
    %v119 = vsel %vm42, %v111, 0.0
    %120 = vadd.xlane.f32.xlu0 %v119
    %v121 = vpop.xlane.xlu0 %120
    %v122 = vsel %vm42, %v112, 0.0
    %123 = vadd.xlane.f32.xlu0 %v122
    %v124 = vpop.xlane.xlu0 %123
    %v125 = vsub.f32 %v87, %v115
    %v126 = vsub.f32 %v88, %v118
    %v127 = vsub.f32 %v89, %v121
    %v128 = vsub.f32 %v90, %v124
    %v129 = vld [vmem:[#allocation2] sm:$0x1]
    %v130 = vmul.f32 %v125, %v34
    %v131 = vmul.f32 %v126, %v35
    %v132 = vmul.f32 %v127, %v36
    %v133 = vmul.f32 %v128, %v37
    %vm134 = vcmask 7168
    %v135 = vsel %vm134, %v130, 0.0
    %v136 = vsel %vm134, %v131, 0.0
    %v137 = vadd.f32 %v135, %v136
    %v138 = vsel %vm134, %v132, 0.0
    %v139 = vadd.f32 %v137, %v138
    %v140 = vsel %vm134, %v133, 0.0
    %v141 = vadd.f32 %v139, %v140
    %v142 = vrot.slane %v141, 4
    %v143 = vadd.f32 %v141, %v142
    %v144 = vrot.slane %v143, 2
    %v145 = vadd.f32 %v143, %v144
    %v146 = vrot.slane %v145, 1
    %v147 = vadd.f32 %v145, %v146
    %v148 = vadd.f32 %v129, %v147
    %vm149 = vcmask 0
    %150 = vst.msk [vmem:[#allocation2] sm:$0x1] %vm149, %v148
    // Predicated region
    $region26: #{tpu_custom_call.1} parent=1 // pred_check
      %p151 = pneg %p24
    $region27: #{tpu_custom_call.1} parent=1 // pred_check_branch
      %153 = sbr.rel (%p151) target = $region29
    $region28: #{tpu_custom_call.1} parent=1 // pred_region
      %v154 = vld [vmem:[#allocation2] sm:$0x1]
      %v155 = vmul.f32 %v154, 0.25
      %156 = vst.msk [vmem:[#allocation3] sm:$0x1] %vm149, %v155
      %v157 = vld [vmem:[%s3] sm:$0xff]
      %v158 = vld [vmem:[%s4] sm:$0xff]
      %v159 = vlog2.pop %v157
      %v160 = vmul.f32 %v159, 0.6931472
      %v161 = vadd.f32 %v160, 0.0
      %v162 = vadd.f32 %v157, 1.0
      %v163 = vlog2.pop %v162
      %v164 = vmul.f32 %v163, 0.6931472
      %v165 = vadd.f32 %v161, %v164
      %v166 = vadd.f32 %v162, 1.0
      %v167 = vlog2.pop %v166
      %v168 = vmul.f32 %v167, 0.6931472
      %v169 = vadd.f32 %v165, %v168
      %v170 = vadd.f32 %v166, 1.0
      %v171 = vlog2.pop %v170
      %v172 = vmul.f32 %v171, 0.6931472
      %v173 = vadd.f32 %v169, %v172
      %v174 = vadd.f32 %v170, 1.0
      %v175 = vlog2.pop %v174
      %v176 = vmul.f32 %v175, 0.6931472
      %v177 = vadd.f32 %v173, %v176
      %v178 = vadd.f32 %v174, 1.0
      %v179 = vlog2.pop %v178
      %v180 = vmul.f32 %v179, 0.6931472
      %v181 = vadd.f32 %v177, %v180
      %v182 = vadd.f32 %v178, 1.0
      %v183 = vlog2.pop %v182
      %v184 = vmul.f32 %v183, 0.6931472
      %v185 = vadd.f32 %v181, %v184
      %v186 = vadd.f32 %v182, 1.0
      %v187 = vlog2.pop %v186
      %v188 = vmul.f32 %v187, 0.6931472
      %v189 = vadd.f32 %v185, %v188
      %v190 = vadd.f32 %v186, 1.0
      %v191 = vrcp.pop %v190
      %v192 = vmul.f32 1.0, %v191
      %v193 = vmul.f32 %v192, %v192
      %v194 = vmul.f32 %v193, -0.0005952381
      %v195 = vadd.f32 %v194, 0.0007936508
      %v196 = vmul.f32 %v193, %v195
      %v197 = vadd.f32 %v196, -0.0027777778
      %v198 = vmul.f32 %v193, %v197
      %v199 = vadd.f32 %v198, 0.083333336
      %v200 = vmul.f32 %v192, %v199
      %v201 = vsub.f32 %v190, 0.5
      %v202 = vlog2.pop %v190
      %v203 = vmul.f32 %v202, 0.6931472
      %v204 = vmul.f32 %v201, %v203
      %v205 = vsub.f32 %v204, %v190
      %v206 = vadd.f32 %v205, 0.9189385
      %v207 = vadd.f32 %v206, %v200
      %v208 = vsub.f32 %v207, %v189
      %v209 = vlog2.pop %v158
      %v210 = vmul.f32 %v209, 0.6931472
      %v211 = vadd.f32 %v210, 0.0
      %v212 = vadd.f32 %v158, 1.0
      %v213 = vlog2.pop %v212
      %v214 = vmul.f32 %v213, 0.6931472
      %v215 = vadd.f32 %v211, %v214
      %v216 = vadd.f32 %v212, 1.0
      %v217 = vlog2.pop %v216
      %v218 = vmul.f32 %v217, 0.6931472
      %v219 = vadd.f32 %v215, %v218
      %v220 = vadd.f32 %v216, 1.0
      %v221 = vlog2.pop %v220
      %v222 = vmul.f32 %v221, 0.6931472
      %v223 = vadd.f32 %v219, %v222
      %v224 = vadd.f32 %v220, 1.0
      %v225 = vlog2.pop %v224
      %v226 = vmul.f32 %v225, 0.6931472
      %v227 = vadd.f32 %v223, %v226
      %v228 = vadd.f32 %v224, 1.0
      %v229 = vlog2.pop %v228
      %v230 = vmul.f32 %v229, 0.6931472
      %v231 = vadd.f32 %v227, %v230
      %v232 = vadd.f32 %v228, 1.0
      %v233 = vlog2.pop %v232
      %v234 = vmul.f32 %v233, 0.6931472
      %v235 = vadd.f32 %v231, %v234
      %v236 = vadd.f32 %v232, 1.0
      %v237 = vlog2.pop %v236
      %v238 = vmul.f32 %v237, 0.6931472
      %v239 = vadd.f32 %v235, %v238
      %v240 = vadd.f32 %v236, 1.0
      %v241 = vrcp.pop %v240
      %v242 = vmul.f32 1.0, %v241
      %v243 = vmul.f32 %v242, %v242
      %v244 = vmul.f32 %v243, -0.0005952381
      %v245 = vadd.f32 %v244, 0.0007936508
      %v246 = vmul.f32 %v243, %v245
      %v247 = vadd.f32 %v246, -0.0027777778
      %v248 = vmul.f32 %v243, %v247
      %v249 = vadd.f32 %v248, 0.083333336
      %v250 = vmul.f32 %v242, %v249
      %v251 = vsub.f32 %v240, 0.5
      %v252 = vlog2.pop %v240
      %v253 = vmul.f32 %v252, 0.6931472
      %v254 = vmul.f32 %v251, %v253
      %v255 = vsub.f32 %v254, %v240
      %v256 = vadd.f32 %v255, 0.9189385
      %v257 = vadd.f32 %v256, %v250
      %v258 = vsub.f32 %v257, %v239
      %v259 = vadd.f32 %v208, %v258
      %v260 = vadd.f32 %v157, %v158
      %v261 = vlog2.pop %v260
      %v262 = vmul.f32 %v261, 0.6931472
      %v263 = vadd.f32 %v262, 0.0
      %v264 = vadd.f32 %v260, 1.0
      %v265 = vlog2.pop %v264
      %v266 = vmul.f32 %v265, 0.6931472
      %v267 = vadd.f32 %v263, %v266
      %v268 = vadd.f32 %v264, 1.0
      %v269 = vlog2.pop %v268
      %v270 = vmul.f32 %v269, 0.6931472
      %v271 = vadd.f32 %v267, %v270
      %v272 = vadd.f32 %v268, 1.0
      %v273 = vlog2.pop %v272
      %v274 = vmul.f32 %v273, 0.6931472
      %v275 = vadd.f32 %v271, %v274
      %v276 = vadd.f32 %v272, 1.0
      %v277 = vlog2.pop %v276
      %v278 = vmul.f32 %v277, 0.6931472
      %v279 = vadd.f32 %v275, %v278
      %v280 = vadd.f32 %v276, 1.0
      %v281 = vlog2.pop %v280
      %v282 = vmul.f32 %v281, 0.6931472
      %v283 = vadd.f32 %v279, %v282
      %v284 = vadd.f32 %v280, 1.0
      %v285 = vlog2.pop %v284
      %v286 = vmul.f32 %v285, 0.6931472
      %v287 = vadd.f32 %v283, %v286
      %v288 = vadd.f32 %v284, 1.0
      %v289 = vlog2.pop %v288
      %v290 = vmul.f32 %v289, 0.6931472
      %v291 = vadd.f32 %v287, %v290
      %v292 = vadd.f32 %v288, 1.0
      %v293 = vrcp.pop %v292
      %v294 = vmul.f32 1.0, %v293
      %v295 = vmul.f32 %v294, %v294
      %v296 = vmul.f32 %v295, -0.0005952381
      %v297 = vadd.f32 %v296, 0.0007936508
      %v298 = vmul.f32 %v295, %v297
      %v299 = vadd.f32 %v298, -0.0027777778
      %v300 = vmul.f32 %v295, %v299
      %v301 = vadd.f32 %v300, 0.083333336
      %v302 = vmul.f32 %v294, %v301
      %v303 = vsub.f32 %v292, 0.5
      %v304 = vlog2.pop %v292
      %v305 = vmul.f32 %v304, 0.6931472
      %v306 = vmul.f32 %v303, %v305
      %v307 = vsub.f32 %v306, %v292
      %v308 = vadd.f32 %v307, 0.9189385
      %v309 = vadd.f32 %v308, %v302
      %v310 = vsub.f32 %v309, %v291
      %v311 = vsub.f32 %v259, %v310
      %v312 = vsub.f32 -2.4849067, %v311
      %v313 = vsub.f32 %v157, 2.0
      %v314 = vrcp.pop %v157
      %v315 = vmul.f32 1.0, %v314
      %v316 = vadd.f32 %v315, 0.0
      %v317 = vrcp.pop %v162
      %v318 = vmul.f32 1.0, %v317
      %v319 = vadd.f32 %v316, %v318
      %v320 = vrcp.pop %v166
      %v321 = vmul.f32 1.0, %v320
      %v322 = vadd.f32 %v319, %v321
      %v323 = vrcp.pop %v170
      %v324 = vmul.f32 1.0, %v323
      %v325 = vadd.f32 %v322, %v324
      %v326 = vrcp.pop %v174
      %v327 = vmul.f32 1.0, %v326
      %v328 = vadd.f32 %v325, %v327
      %v329 = vrcp.pop %v178
      %v330 = vmul.f32 1.0, %v329
      %v331 = vadd.f32 %v328, %v330
      %v332 = vrcp.pop %v182
      %v333 = vmul.f32 1.0, %v332
      %v334 = vadd.f32 %v331, %v333
      %v335 = vrcp.pop %v186
      %v336 = vmul.f32 1.0, %v335
      %v337 = vadd.f32 %v334, %v336
      %v338 = vmul.f32 %v193, 0.003968254
      %v339 = vsub.f32 0.008333334, %v338
      %v340 = vmul.f32 %v193, %v339
      %v341 = vsub.f32 0.083333336, %v340
      %v342 = vmul.f32 %v193, %v341
      %v343 = vmul.f32 %v192, 0.5
      %v344 = vsub.f32 %v203, %v343
      %v345 = vsub.f32 %v344, %v342
      %v346 = vsub.f32 %v345, %v337
      %v347 = vmul.f32 %v313, %v346
      %v348 = vadd.f32 %v312, %v347
      %v349 = vsub.f32 %v158, 3.0
      %v350 = vrcp.pop %v158
      %v351 = vmul.f32 1.0, %v350
      %v352 = vadd.f32 %v351, 0.0
      %v353 = vrcp.pop %v212
      %v354 = vmul.f32 1.0, %v353
      %v355 = vadd.f32 %v352, %v354
      %v356 = vrcp.pop %v216
      %v357 = vmul.f32 1.0, %v356
      %v358 = vadd.f32 %v355, %v357
      %v359 = vrcp.pop %v220
      %v360 = vmul.f32 1.0, %v359
      %v361 = vadd.f32 %v358, %v360
      %v362 = vrcp.pop %v224
      %v363 = vmul.f32 1.0, %v362
      %v364 = vadd.f32 %v361, %v363
      %v365 = vrcp.pop %v228
      %v366 = vmul.f32 1.0, %v365
      %v367 = vadd.f32 %v364, %v366
      %v368 = vrcp.pop %v232
      %v369 = vmul.f32 1.0, %v368
      %v370 = vadd.f32 %v367, %v369
      %v371 = vrcp.pop %v236
      %v372 = vmul.f32 1.0, %v371
      %v373 = vadd.f32 %v370, %v372
      %v374 = vmul.f32 %v243, 0.003968254
      %v375 = vsub.f32 0.008333334, %v374
      %v376 = vmul.f32 %v243, %v375
      %v377 = vsub.f32 0.083333336, %v376
      %v378 = vmul.f32 %v243, %v377
      %v379 = vmul.f32 %v242, 0.5
      %v380 = vsub.f32 %v253, %v379
      %v381 = vsub.f32 %v380, %v378
      %v382 = vsub.f32 %v381, %v373
      %v383 = vmul.f32 %v349, %v382
      %v384 = vadd.f32 %v348, %v383
      %v385 = vsub.f32 2.0, %v157
      %v386 = vadd.f32 %v385, 3.0
      %v387 = vsub.f32 %v386, %v158
      %v388 = vrcp.pop %v260
      %v389 = vmul.f32 1.0, %v388
      %v390 = vadd.f32 %v389, 0.0
      %v391 = vrcp.pop %v264
      %v392 = vmul.f32 1.0, %v391
      %v393 = vadd.f32 %v390, %v392
      %v394 = vrcp.pop %v268
      %v395 = vmul.f32 1.0, %v394
      %v396 = vadd.f32 %v393, %v395
      %v397 = vrcp.pop %v272
      %v398 = vmul.f32 1.0, %v397
      %v399 = vadd.f32 %v396, %v398
      %v400 = vrcp.pop %v276
      %v401 = vmul.f32 1.0, %v400
      %v402 = vadd.f32 %v399, %v401
      %v403 = vrcp.pop %v280
      %v404 = vmul.f32 1.0, %v403
      %v405 = vadd.f32 %v402, %v404
      %v406 = vrcp.pop %v284
      %v407 = vmul.f32 1.0, %v406
      %v408 = vadd.f32 %v405, %v407
      %v409 = vrcp.pop %v288
      %v410 = vmul.f32 1.0, %v409
      %v411 = vadd.f32 %v408, %v410
      %v412 = vmul.f32 %v295, 0.003968254
      %v413 = vsub.f32 0.008333334, %v412
      %v414 = vmul.f32 %v295, %v413
      %v415 = vsub.f32 0.083333336, %v414
      %v416 = vmul.f32 %v295, %v415
      %v417 = vmul.f32 %v294, 0.5
      %v418 = vsub.f32 %v305, %v417
      %v419 = vsub.f32 %v418, %v416
      %v420 = vsub.f32 %v419, %v411
      %v421 = vmul.f32 %v387, %v420
      %v422 = vadd.f32 %v384, %v421
      %vm423 = vcmask 31744
      %v424 = vsel %vm423, %v422, 0.0
      %425 = vadd.xlane.f32.xlu0 %v424
      %v426 = vpop.xlane.xlu0 %425
      %v427 = vrot.slane %v426, 4
      %v428 = vadd.f32 %v426, %v427
      %v429 = vrot.slane %v428, 2
      %v430 = vadd.f32 %v428, %v429
      %v431 = vrot.slane %v430, 1
      %v432 = vadd.f32 %v430, %v431
      %v433 = vmul.f32 %v432, 0.25
      %434 = vst.msk [vmem:[#allocation5] sm:$0x1] %vm149, %v433
    $region29: #{tpu_custom_call.1} parent=1 // pred_fallthru
      _
    // Predicated region
    $region30: #{tpu_custom_call.1} parent=1 // pred_check
      _
    $region31: #{tpu_custom_call.1} parent=1 // pred_check_branch
      %436 = sbr.rel (0) target = $region33
    $region32: #{tpu_custom_call.1} parent=1 // pred_region
      %s438 = ssub.s32 16, 16
      %439 = vsyncadd [#allocation4], %s438
      %s441 = sshll.u32 [#allocation3], 4
      %s442 = int_to_ptr.vmem [resolvable:$true] %s441
      %444 = dma.vmem_to_hbm [thread:$0]  %s442, 16, %s5, [#allocation4]
    $region33: #{tpu_custom_call.1} parent=1 // pred_fallthru
      _
    // Predicated region
    $region34: #{tpu_custom_call.1} parent=1 // pred_check
      _
    $region35: #{tpu_custom_call.1} parent=1 // pred_check_branch
      %446 = sbr.rel (0) target = $region37
    $region36: #{tpu_custom_call.1} parent=1 // pred_region
      %s448 = ssub.s32 16, 16
      %449 = vsyncadd [#allocation6], %s448
      %s451 = sshll.u32 [#allocation5], 4
      %s452 = int_to_ptr.vmem [resolvable:$true] %s451
      %454 = dma.vmem_to_hbm [thread:$0]  %s452, 16, %s6, [#allocation6]
    $region37: #{tpu_custom_call.1} parent=1 // pred_fallthru
      _
    // Predicated region
    $region38: #{tpu_custom_call.1} parent=1 // pred_check
      _
    $region39: #{tpu_custom_call.1} parent=1 // pred_check_branch
      %456 = sbr.rel (0) target = $region41
    $region40: #{tpu_custom_call.1} parent=1 // pred_region
      %457 = dma.done [#allocation4], 16
    $region41: #{tpu_custom_call.1} parent=1 // pred_fallthru
      _
    // Predicated region
    $region42: #{tpu_custom_call.1} parent=1 // pred_check
      _
    $region43: #{tpu_custom_call.1} parent=1 // pred_check_branch
      %459 = sbr.rel (0) target = $region45
    $region44: #{tpu_custom_call.1} parent=1 // pred_region
      %460 = dma.done [#allocation6], 16
    $region45: #{tpu_custom_call.1} parent=1 // pred_fallthru
      _
    %461 = vsyncpa [#allocation4], 1
    %462 = vsyncpa [#allocation6], 1

</llo_original>
